<compile_context>
chip_gen: v7x
topology: tpu7x:2x2x1
jax: 0.10.0
libtpu: 0.0.40
codegen_flags: <defaults>
</compile_context>

<pallas_src>
import jax
import jax.numpy as jnp
from jax.experimental import pallas as pl
from jax.experimental.pallas import tpu as pltpu


def _round_up(x, m):
    return ((x + m - 1) // m) * m


# ---------------------------------------------------------------------------
# Kernel: tiled weighted spatial pooling.
#   x2d : [Rp, HWp]   (Rp = padded B*C rows, HWp = padded H*W)
#   w   : [HWp, 2]    column 0 = semantic pool weights (uniform 1/HW),
#                     column 1 = artifact pool weights (resize adjoint / crop^2),
#                     zero on padded columns.
#   out : [Rp, 2]     out[r, k] = sum_hw x2d[r, hw] * w[hw, k]
# Grid: (row blocks [parallel], HW blocks [arbitrary, reduction]).
# ---------------------------------------------------------------------------
def _weighted_pool_kernel(x_ref, w_ref, out_ref):
    # Output block index is independent of the HW grid axis -> stays resident
    # in VMEM across the reduction; init on the first HW block, accumulate.
    @pl.when(pl.program_id(1) == 0)
    def _():
        out_ref[...] = jnp.zeros_like(out_ref)

    out_ref[...] += jnp.dot(x_ref[...], w_ref[...],
                            preferred_element_type=jnp.float32)


def weighted_pool(x2d, w, *, row_block, hw_block):
    Rp, HWp = x2d.shape
    n_w = w.shape[1]
    grid = (Rp // row_block, HWp // hw_block)
    return pl.pallas_call(
        _weighted_pool_kernel,
        out_shape=jax.ShapeDtypeStruct((Rp, n_w), jnp.float32),
        grid_spec=pltpu.PrefetchScalarGridSpec(
            num_scalar_prefetch=0,
            grid=grid,
            in_specs=[
                pl.BlockSpec((row_block, hw_block), lambda i, j: (i, j)),
                pl.BlockSpec((hw_block, n_w), lambda i, j: (j, 0)),
            ],
            out_specs=pl.BlockSpec((row_block, n_w), lambda i, j: (i, 0)),
        ),
        compiler_params=pltpu.CompilerParams(
            # Row axis shards across TensorCores on v7x; no-op on v5e/v6e.
            dimension_semantics=("parallel", "arbitrary"),
            # Explicit VMEM budget; tiles here are <=~1 MiB double-buffered,
            # well inside v5e/v6e/v7x scoped limits.
            vmem_limit_bytes=32 * 1024 * 1024,
        ),
    )(x2d, w)


# ---------------------------------------------------------------------------
# CospyDetector wrapper
# ---------------------------------------------------------------------------
class CospyDetectorPallas:
    def __init__(self, num_classes=1, sem_dim=32, art_dim=32, art_crop=8,
                 max_row_block=64, max_hw_block=2048):
        self.num_classes = num_classes
        self.sem_dim = sem_dim
        self.art_dim = art_dim
        self.art_crop = art_crop
        self.max_row_block = max_row_block
        self.max_hw_block = max_hw_block

        # CLIP normalization (SemanticDetector) / ImageNet (ArtifactDetector).
        self.sem_mean = jnp.array([0.48145466, 0.4578275, 0.40821073], jnp.float32)
        self.sem_std = jnp.array([0.26862954, 0.26130258, 0.27577711], jnp.float32)
        self.art_mean = jnp.array([0.485, 0.456, 0.406], jnp.float32)
        self.art_std = jnp.array([0.229, 0.224, 0.225], jnp.float32)

        # Deterministic parameter init (synthetic, not a checkpoint).
        key = jax.random.PRNGKey(0)
        ks = jax.random.split(key, 9)
        C = 3
        init = lambda k, s, scale: (scale * jax.random.normal(k, s)).astype(jnp.float32)
        self.params = {
            "w_se": init(ks[0], (C, sem_dim), 0.1),
            "b_se": init(ks[1], (1, sem_dim), 0.01),
            "w_ae": init(ks[2], (C, art_dim), 0.1),
            "b_ae": init(ks[3], (1, art_dim), 0.01),
            "w_sf": init(ks[4], (sem_dim, 1), 0.1),
            "b_sf": jnp.zeros((1, 1), jnp.float32),
            "w_af": init(ks[5], (art_dim, 1), 0.1),
            "b_af": jnp.zeros((1, 1), jnp.float32),
            "w_cls_sem": init(ks[6], (sem_dim, num_classes), 0.1),
            "w_cls_art": init(ks[7], (art_dim, num_classes), 0.1),
            "b_cls": init(ks[8], (1, num_classes), 0.01),
        }

        # Fold normalization + encoder + coeff head + classifier into four
        # tiny K=3 affine maps per modality (host-side, once).
        p = self.params
        self.G_sem, self.g_sem, self.A_sem, self.c_sem = self._fold_head(
            self.sem_mean, self.sem_std, p["w_se"], p["b_se"],
            p["w_sf"], p["b_sf"], p["w_cls_sem"])
        self.G_art, self.g_art, self.A_art, self.c_art = self._fold_head(
            self.art_mean, self.art_std, p["w_ae"], p["b_ae"],
            p["w_af"], p["b_af"], p["w_cls_art"])

        self._w_art_cache = {}

    @staticmethod
    def _fold_head(mean, std, w_enc, b_enc, w_coef, b_coef, w_cls):
        # pool_norm = (pool_raw - mean) / std
        # logit     = pool_norm @ (w_enc @ w_coef) + (b_enc @ w_coef + b_coef)
        # value     = pool_norm @ (w_enc @ w_cls)  +  b_enc @ w_cls
        # Fold the normalization into the matrices/offsets:
        inv = 1.0 / std                       # [C]
        ms = mean * inv                       # [C]
        P_g = w_enc @ w_coef                  # [C, 1]
        P_a = w_enc @ w_cls                   # [C, num_classes]
        G = inv[:, None] * P_g                # gate matrix on raw pool
        g = b_enc @ w_coef + b_coef - ms[None, :] @ P_g
        A = inv[:, None] * P_a                # value matrix on raw pool
        c = b_enc @ w_cls - ms[None, :] @ P_a
        return G, g, A, c

    def _art_pool_weights(self, H, W):
        # Spatial weights of (mean o bilinear-resize): exact adjoint of the
        # linear map, obtained via grad of a linear scalar function.
        key = (H, W)
        if key not in self._w_art_cache:
            crop = self.art_crop

            def pool_of_resized(img2d):
                r = jax.image.resize(img2d, (crop, crop),
                                     method="bilinear", antialias=False)
                return jnp.mean(r)

            w2d = jax.grad(pool_of_resized)(jnp.zeros((H, W), jnp.float32))
            self._w_art_cache[key] = w2d.reshape(H * W)
        return self._w_art_cache[key]

    def __call__(self, x):
        # x: [B, 3, H, W] float32 in [0, 1] (NCHW, PyTorch convention)
        B, C, H, W = x.shape
        assert C == 3, "CospyDetector expects 3-channel RGB input"
        HW = H * W
        R = B * C

        # Tile sizes: lane-dense HW blocks (<=2048 lanes), sublane-dense rows.
        hw_block = min(self.max_hw_block, _round_up(HW, 128))
        HWp = _round_up(HW, hw_block)
        row_block = min(self.max_row_block, _round_up(R, 8))
        Rp = _round_up(R, row_block)

        x2d = x.reshape(R, HW)
        if (Rp, HWp) != (R, HW):
            x2d = jnp.pad(x2d, ((0, Rp - R), (0, HWp - HW)))

        # Pool weights: uniform mean (semantic) and resize-adjoint mean
        # (artifact); zero on padded columns so padding never biases the sums.
        w_sem = jnp.full((HW,), 1.0 / HW, jnp.float32)
        w_art = self._art_pool_weights(H, W)
        w = jnp.stack([w_sem, w_art], axis=1)          # [HW, 2]
        if HWp != HW:
            w = jnp.pad(w, ((0, HWp - HW), (0, 0)))

        # Single Pallas pass over x: both raw (un-normalized) pools at once.
        pooled = weighted_pool(x2d, w, row_block=row_block, hw_block=hw_block)
        pooled = pooled[:R].reshape(B, C, 2)
        sem_pool = pooled[..., 0]                      # [B, C] raw spatial mean
        art_pool = pooled[..., 1]                      # [B, C] raw resized mean

        # Folded head (normalize + encoders + sigmoid gates + classifier):
        # ~100 flops on [B, 3]; run in plain XLA (per perf review) rather than
        # a second kernel launch of MXU-hostile K=3 matmuls.
        out = (jax.nn.sigmoid(sem_pool @ self.G_sem + self.g_sem)
               * (sem_pool @ self.A_sem + self.c_sem)
               + jax.nn.sigmoid(art_pool @ self.G_art + self.g_art)
               * (art_pool @ self.A_art + self.c_art)
               + self.params["b_cls"])
        return out

    # Pure-JAX reference (unfused, mirrors the PyTorch module structure).
    def reference(self, x):
        B, C, H, W = x.shape
        p = self.params
        ms = self.sem_mean.reshape(1, C, 1)
        ss = self.sem_std.reshape(1, C, 1)
        ma = self.art_mean.reshape(1, C, 1)
        sa = self.art_std.reshape(1, C, 1)

        xs = (x.reshape(B, C, H * W) - ms) / ss
        sem_pool = xs.mean(-1)
        xa = jax.image.resize(x, (B, C, self.art_crop, self.art_crop),
                              method="bilinear", antialias=False)
        xa = (xa.reshape(B, C, -1) - ma) / sa
        art_pool = xa.mean(-1)

        sem_feat = sem_pool @ p["w_se"] + p["b_se"]
        art_feat = art_pool @ p["w_ae"] + p["b_ae"]
        sem_coeff = jax.nn.sigmoid(sem_feat @ p["w_sf"] + p["b_sf"])
        art_coeff = jax.nn.sigmoid(art_feat @ p["w_af"] + p["b_af"])
        gated = jnp.concatenate([sem_coeff * sem_feat, art_coeff * art_feat], axis=1)
        w_cls = jnp.concatenate([p["w_cls_sem"], p["w_cls_art"]], axis=0)
        return gated @ w_cls + p["b_cls"]


if __name__ == "__main__":
    key = jax.random.PRNGKey(0)
    # small image batch: B=2, C=3, H=W=16, values in [0, 1]
    x = jax.random.uniform(key, (2, 3, 16, 16), dtype=jnp.float32)

    model = CospyDetectorPallas(num_classes=1, sem_dim=32, art_dim=32, art_crop=8)

    out = jax.block_until_ready(model(x))
    ref = model.reference(x)

    assert out.shape == (2, 1)
    assert jnp.allclose(out, ref, atol=1e-4, rtol=1e-4), (out, ref)

    print("KERNEL_OK")
</pallas_src>

<mosaic_0001>
module attributes {stable_mosaic.version = 11 : i64} {
  func.func @_weighted_pool_kernel(%arg0: i32, %arg1: i32, %arg2: memref<8x256xf32, #tpu.memory_space<vmem>>, %arg3: memref<256x2xf32, #tpu.memory_space<vmem>>, %arg4: memref<8x2xf32, #tpu.memory_space<vmem>>) attributes {dimension_semantics = [#tpu.dimension_semantics<parallel>, #tpu.dimension_semantics<arbitrary>], iteration_bounds = array<i64: 1, 1>, scalar_prefetch = 0 : i64, scratch_operands = 0 : i64, tpu.core_type = #tpu.core_type<tc>, window_params = [{transform_indices = @transform_0, window_bounds = array<i64: 8, 256>}, {transform_indices = @transform_1, window_bounds = array<i64: 256, 2>}, {transform_indices = @transform_2, window_bounds = array<i64: 8, 2>}]} {
    %c0_i32 = arith.constant 0 : i32
    %0 = arith.cmpi eq, %arg1, %c0_i32 : i32
    %1 = arith.extui %0 : i1 to i32
    %c0_i32_0 = arith.constant 0 : i32
    %2 = arith.cmpi ne, %1, %c0_i32_0 : i32
    scf.if %2 {
      %cst_8 = arith.constant 0.000000e+00 : f32
      %9 = vector.broadcast %cst_8 : f32 to vector<8x2xf32>
      %c0_9 = arith.constant 0 : index
      %c0_10 = arith.constant 0 : index
      %10 = vector.load %arg4[%c0_9, %c0_10] : memref<8x2xf32, #tpu.memory_space<vmem>>, vector<8x2xf32>
      tpu.vector_store %arg4[%c0_9, %c0_10], %9 {strides = array<i32>} : memref<8x2xf32, #tpu.memory_space<vmem>>, vector<8x2xf32>,
    } else {
    }
    %c0 = arith.constant 0 : index
    %c0_1 = arith.constant 0 : index
    %3 = vector.load %arg4[%c0, %c0_1] : memref<8x2xf32, #tpu.memory_space<vmem>>, vector<8x2xf32>
    %c0_2 = arith.constant 0 : index
    %c0_3 = arith.constant 0 : index
    %4 = vector.load %arg2[%c0_2, %c0_3] : memref<8x256xf32, #tpu.memory_space<vmem>>, vector<8x256xf32>
    %c0_4 = arith.constant 0 : index
    %c0_5 = arith.constant 0 : index
    %5 = vector.load %arg3[%c0_4, %c0_5] : memref<256x2xf32, #tpu.memory_space<vmem>>, vector<256x2xf32>
    %cst = arith.constant dense<0.000000e+00> : vector<8x2xf32>
    %6 = tpu.matmul %4, %5, %cst {dimension_numbers = #tpu.dot_dimension_numbers<[1], [0], [0], [1], [0, 0, 1, 1], [], []>} : vector<8x256xf32>, vector<256x2xf32>, vector<8x2xf32> -> vector<8x2xf32>
    %7 = arith.addf %3, %6 : vector<8x2xf32>
    %c0_6 = arith.constant 0 : index
    %c0_7 = arith.constant 0 : index
    %8 = vector.load %arg4[%c0_6, %c0_7] : memref<8x2xf32, #tpu.memory_space<vmem>>, vector<8x2xf32>
    tpu.vector_store %arg4[%c0_6, %c0_7], %7 {strides = array<i32>} : memref<8x2xf32, #tpu.memory_space<vmem>>, vector<8x2xf32>,
    return
  }
  func.func @transform_0(%arg0: i32, %arg1: i32) -> (i32, i32) {
    %c0_i32 = arith.constant 0 : i32
    return %arg0, %arg1 : i32, i32
  }
  func.func @transform_1(%arg0: i32, %arg1: i32) -> (i32, i32) {
    %c0_i32 = arith.constant 0 : i32
    %c0_i32_0 = arith.constant 0 : i32
    return %arg1, %c0_i32 : i32, i32
  }
  func.func @transform_2(%arg0: i32, %arg1: i32) -> (i32, i32) {
    %c0_i32 = arith.constant 0 : i32
    %c0_i32_0 = arith.constant 0 : i32
    return %arg0, %c0_i32 : i32, i32
  }
}

</mosaic_0001>

<llo_original>
// kernel: tpu_custom_call.1
$region0: #{tpu_custom_call.1}
  #allocation0 [shape = 'u32[]', space=smem, size = 0x4, offset = 0x4, fixed_abs, tag = 'smem constant byte address 0x4 - core index']
  #allocation1 [shape = 'u32[144,128]{1,0:T(1,128)}', space=vmem, size = 0x12000, scoped, tag = 'internal scratch']
  %s0 = inlined_call_operand.vmem [shape: f32[8,256], index: 0, kind: input, shape index: {}]
  %s1 = inlined_call_operand.vmem [shape: f32[256,2], index: 1, kind: input, shape index: {}]
  %s2 = inlined_call_operand.vmem [shape: f32[8,2], index: 2, kind: output, shape index: {}]
  %s3 = sld [smem:[#allocation0]]
  $region22: #{tpu_custom_call.1} parent=0
    _
  %s5 = ssub.s32 1, %s3
  %s6 = scalar_select 0, %s5, %s3
  // Predicated region
  $region2: #{tpu_custom_call.1} parent=0 // pred_check
    _
  $region3: #{tpu_custom_call.1} parent=0 // pred_check_branch
    %8 = sbr.rel (0) target = $region5
  $region4: #{tpu_custom_call.1} parent=0 // pred_region
    _
  $region5: #{tpu_custom_call.1} parent=0 // pred_fallthru
    _
  // Predicated region
  $region6: #{tpu_custom_call.1} parent=0 // pred_check
    _
  $region7: #{tpu_custom_call.1} parent=0 // pred_check_branch
    %10 = sbr.rel (0) target = $region9
  $region8: #{tpu_custom_call.1} parent=0 // pred_region
    _
  $region9: #{tpu_custom_call.1} parent=0 // pred_fallthru
    _
  %p11 = scmp.eq.s32.totalorder 0, 0
  // Predicated region
  $region10: #{tpu_custom_call.1} parent=0 // pred_check
    %p12 = pneg %p11
  $region11: #{tpu_custom_call.1} parent=0 // pred_check_branch
    %14 = sbr.rel (%p12) target = $region13
  $region12: #{tpu_custom_call.1} parent=0 // pred_region
    %vm15 = vcmask 15360
    %16 = vst.msk [vmem:[%s2] sm:$0xff] %vm15, 0.0
  $region13: #{tpu_custom_call.1} parent=0 // pred_fallthru
    _
  %v17 = vld [vmem:[%s2] sm:$0xff]
  %v18 = vld [vmem:[%s0] sm:$0xff]
  %v19 = vld [vmem:[%s0 + $0x8] sm:$0xff]
  %v20 = vld [vmem:[%s1] sm:$0xff]
  %v21 = vld [vmem:[%s1 + $0x8] sm:$0xff]
  %v22 = vld [vmem:[%s1 + $0x10] sm:$0xff]
  %v23 = vld [vmem:[%s1 + $0x18] sm:$0xff]
  %v24 = vld [vmem:[%s1 + $0x20] sm:$0xff]
  %v25 = vld [vmem:[%s1 + $0x28] sm:$0xff]
  %v26 = vld [vmem:[%s1 + $0x30] sm:$0xff]
  %v27 = vld [vmem:[%s1 + $0x38] sm:$0xff]
  %v28 = vld [vmem:[%s1 + $0x40] sm:$0xff]
  %v29 = vld [vmem:[%s1 + $0x48] sm:$0xff]
  %v30 = vld [vmem:[%s1 + $0x50] sm:$0xff]
  %v31 = vld [vmem:[%s1 + $0x58] sm:$0xff]
  %v32 = vld [vmem:[%s1 + $0x60] sm:$0xff]
  %v33 = vld [vmem:[%s1 + $0x68] sm:$0xff]
  %v34 = vld [vmem:[%s1 + $0x70] sm:$0xff]
  %v35 = vld [vmem:[%s1 + $0x78] sm:$0xff]
  %v36 = vld [vmem:[%s1 + $0x80] sm:$0xff]
  %v37 = vld [vmem:[%s1 + $0x88] sm:$0xff]
  %v38 = vld [vmem:[%s1 + $0x90] sm:$0xff]
  %v39 = vld [vmem:[%s1 + $0x98] sm:$0xff]
  %v40 = vld [vmem:[%s1 + $0xa0] sm:$0xff]
  %v41 = vld [vmem:[%s1 + $0xa8] sm:$0xff]
  %v42 = vld [vmem:[%s1 + $0xb0] sm:$0xff]
  %v43 = vld [vmem:[%s1 + $0xb8] sm:$0xff]
  %v44 = vld [vmem:[%s1 + $0xc0] sm:$0xff]
  %v45 = vld [vmem:[%s1 + $0xc8] sm:$0xff]
  %v46 = vld [vmem:[%s1 + $0xd0] sm:$0xff]
  %v47 = vld [vmem:[%s1 + $0xd8] sm:$0xff]
  %v48 = vld [vmem:[%s1 + $0xe0] sm:$0xff]
  %v49 = vld [vmem:[%s1 + $0xe8] sm:$0xff]
  %v50 = vld [vmem:[%s1 + $0xf0] sm:$0xff]
  %v51 = vld [vmem:[%s1 + $0xf8] sm:$0xff]
  %52 = vmatprep.subr.mxu0 0.0
  %53 = vmatpush1.msra.mxu0 %v20
  %54 = vmatprep.subr.mxu0 0.0
  %55 = vmatpush1.msra.mxu0 %v21
  %56 = vmatprep.subr.mxu0 0.0
  %57 = vmatpush1.msra.mxu0 %v22
  %58 = vmatprep.subr.mxu0 0.0
  %59 = vmatpush1.msra.mxu0 %v23
  %60 = vmatprep.subr.mxu0 0.0
  %61 = vmatpush1.msra.mxu0 %v24
  %62 = vmatprep.subr.mxu0 0.0
  %63 = vmatpush1.msra.mxu0 %v25
  %64 = vmatprep.subr.mxu0 0.0
  %65 = vmatpush1.msra.mxu0 %v26
  %66 = vmatprep.subr.mxu0 0.0
  %67 = vmatpush1.msra.mxu0 %v27
  %68 = vmatprep.subr.mxu0 0.0
  %69 = vmatpush1.msra.mxu0 %v28
  %70 = vmatprep.subr.mxu0 0.0
  %71 = vmatpush1.msra.mxu0 %v29
  %72 = vmatprep.subr.mxu0 0.0
  %73 = vmatpush1.msra.mxu0 %v30
  %74 = vmatprep.subr.mxu0 0.0
  %75 = vmatpush1.msra.mxu0 %v31
  %76 = vmatprep.subr.mxu0 0.0
  %77 = vmatpush1.msra.mxu0 %v32
  %78 = vmatprep.subr.mxu0 0.0
  %79 = vmatpush1.msra.mxu0 %v33
  %80 = vmatprep.subr.mxu0 0.0
  %81 = vmatpush1.msra.mxu0 %v34
  %82 = vmatprep.subr.mxu0 0.0
  %83 = vmatpush1.msra.mxu0 %v35
  %84 = vmatprep.subr.mxu0 0.0
  %85 = vmatpush1.msra.mxu0 %v36
  %86 = vmatprep.subr.mxu0 0.0
  %87 = vmatpush1.msra.mxu0 %v37
  %88 = vmatprep.subr.mxu0 0.0
  %89 = vmatpush1.msra.mxu0 %v38
  %90 = vmatprep.subr.mxu0 0.0
  %91 = vmatpush1.msra.mxu0 %v39
  %92 = vmatprep.subr.mxu0 0.0
  %93 = vmatpush1.msra.mxu0 %v40
  %94 = vmatprep.subr.mxu0 0.0
  %95 = vmatpush1.msra.mxu0 %v41
  %96 = vmatprep.subr.mxu0 0.0
  %97 = vmatpush1.msra.mxu0 %v42
  %98 = vmatprep.subr.mxu0 0.0
  %99 = vmatpush1.msra.mxu0 %v43
  %100 = vmatprep.subr.mxu0 0.0
  %101 = vmatpush1.msra.mxu0 %v44
  %102 = vmatprep.subr.mxu0 0.0
  %103 = vmatpush1.msra.mxu0 %v45
  %104 = vmatprep.subr.mxu0 0.0
  %105 = vmatpush1.msra.mxu0 %v46
  %106 = vmatprep.subr.mxu0 0.0
  %107 = vmatpush1.msra.mxu0 %v47
  %108 = vmatprep.subr.mxu0 0.0
  %109 = vmatpush1.msra.mxu0 %v48
  %110 = vmatprep.subr.mxu0 0.0
  %111 = vmatpush1.msra.mxu0 %v49
  %112 = vmatprep.subr.mxu0 0.0
  %113 = vmatpush1.msra.mxu0 %v50
  %114 = vmatprep.subr.mxu0 0.0
  %115 = vmatpush1.msra.mxu0 %v51
  %116 = vmatprep.mubr.f32.mxu0 %v19
  %117 = vmatmul.mubr.f32.gmra.mrb[0].mxu0 %v18
  %v118 = vpop.f32.mrb[0].mxu0
  %v119 = vadd.f32 0.0, %v118
  %v120 = vpop.f32.mrb[0].mxu0
  %121 = vdwg.mxu0
  %v122 = vadd.f32 %v17, %v119
  %vm123 = vcmask 15360
  %124 = vst.msk [vmem:[%s2] sm:$0xff] %vm123, %v122
  // Predicated region
  $region14: #{tpu_custom_call.1} parent=0 // pred_check
    _
  $region15: #{tpu_custom_call.1} parent=0 // pred_check_branch
    %126 = sbr.rel (0) target = $region17
  $region16: #{tpu_custom_call.1} parent=0 // pred_region
    _
  $region17: #{tpu_custom_call.1} parent=0 // pred_fallthru
    _
  // Predicated region
  $region18: #{tpu_custom_call.1} parent=0 // pred_check
    _
  $region19: #{tpu_custom_call.1} parent=0 // pred_check_branch
    %128 = sbr.rel (0) target = $region21
  $region20: #{tpu_custom_call.1} parent=0 // pred_region
    _
  $region21: #{tpu_custom_call.1} parent=0 // pred_fallthru
    _

</llo_original>
